<compile_context>
chip_gen: v5e
topology: v5e:2x2
jax: 0.10.0
libtpu: 0.0.40
codegen_flags: <defaults>
</compile_context>

<pallas_src>
import math

import jax
import jax.numpy as jnp
from jax.experimental import pallas as pl
from jax.experimental.pallas import tpu as pltpu


def make_pos_emb(d_model: int, max_len: int = 5000, dtype=jnp.float32):
    """Buffer setup (mirrors nn.Module.__init__); also handles odd d_model."""
    position = jnp.arange(max_len, dtype=jnp.float32)[:, None]            # (max_len, 1)
    div_term = jnp.exp(
        jnp.arange(0, d_model, 2, dtype=jnp.float32) * (-math.log(10000.0) / d_model)
    )                                                                      # (ceil(d/2),)
    angles = position * div_term                                           # (max_len, ceil(d/2))
    pe = jnp.zeros((max_len, d_model), dtype=jnp.float32)
    pe = pe.at[:, 0::2].set(jnp.sin(angles))
    pe = pe.at[:, 1::2].set(jnp.cos(angles[:, : d_model // 2]))
    return pe.astype(dtype)                                                # (max_len, d_model)


# ----------------------------- kernel bodies --------------------------------


def _add_pe_kernel_rows(x_ref, pe_ref, o_ref):
    # x/o: (TR, L), pe: (TR, L) -- pure vreg-aligned elementwise add.
    o_ref[...] = (x_ref[...] + pe_ref[...]).astype(o_ref.dtype)


def _add_pe_kernel_batched(x_ref, pe_ref, o_ref):
    # x/o: (B, TR, L), pe: (TR, L); leading-dim broadcast is cheap unrolled vadds.
    o_ref[...] = (x_ref[...] + pe_ref[...][None, :, :]).astype(o_ref.dtype)


# ----------------------------- tiling policy ---------------------------------

_PER_TILE_TARGET = 2 << 20   # ~2 MiB per x tile: past the measured step-overhead knee


def _vmem_budget_bytes():
    """Generation-aware (tile budget, scoped vmem limit)."""
    budget, limit = 24 << 20, 32 << 20           # conservative default, safe on v7x
    try:
        cap = int(pltpu.get_tpu_info().vmem_capacity_bytes)
        if cap >= (96 << 20):                    # v5e / v6e: 128 MiB physical VMEM
            budget, limit = 48 << 20, 64 << 20
    except Exception:
        pass                                      # keep conservative defaults
    return budget, limit


def _fit_rows(tr: int, num_rows: int, sub: int) -> int:
    """Clamp a row-tile: full extent, or a multiple of the sublane granularity."""
    if tr >= num_rows:
        return num_rows
    tr = max(sub, (tr // sub) * sub)
    return min(tr, num_rows)


def _pe_add_tiled(x3, pe2):
    """x3: (B, R, L); pe2: (P, L) with P >= R. Returns x3 + pe2[:R][None]."""
    B, R, L = x3.shape
    P = pe2.shape[0]
    itemsize = x3.dtype.itemsize
    sub = max(8, 32 // itemsize)                 # 8 rows f32, 16 bf16, 32 int8
    row_bytes = L * itemsize
    budget, vmem_limit = _vmem_budget_bytes()

    # Prefer folding batch into the block (grid=(n_r,)): cuts per-step fixed overhead
    # (~0.35 us) by B while keeping the PE tile resident per row tile.
    fold = ((4 * B + 2) * min(R, sub) * row_bytes) <= budget
    if fold:
        tr_cap = max(1, budget // ((4 * B + 2) * row_bytes))
        tr_tgt = max(sub, _PER_TILE_TARGET // max(1, B * row_bytes))
    else:
        tr_cap = max(1, budget // (6 * row_bytes))
        tr_tgt = max(sub, _PER_TILE_TARGET // row_bytes)
    tr = _fit_rows(min(tr_cap, tr_tgt), R, sub)

    # Keep at least 2 grid steps when possible so both TensorCores (v7x) / megacore
    # get work under "parallel" semantics.
    steps = pl.cdiv(R, tr) * (1 if fold else B)
    if steps < 2 and R > sub:
        tr = _fit_rows(-(-R // 2), R, sub)

    # BlockSpec legality for the PE tile: block row-dim must be a multiple of 8 or
    # equal the PE array's full extent. If tr == R with R not sublane-aligned and the
    # PE table is longer than R, slice it down so the block is full-extent.
    if tr % 8 != 0 and tr != P:
        pe2 = jax.lax.slice(pe2, (0, 0), (R, L))
        P = R

    n_r = pl.cdiv(R, tr)
    cost = pl.CostEstimate(
        flops=B * R * L,
        transcendentals=0,
        bytes_accessed=(2 * B * R * L + R * L) * itemsize,   # read x, write out, read pe once
    )
    # NOTE: default double buffering kept on purpose (HBM-BW bound; extra buffers
    # would only shrink the affordable tile).

    if fold:
        return pl.pallas_call(
            _add_pe_kernel_batched,
            out_shape=jax.ShapeDtypeStruct((B, R, L), x3.dtype),
            grid=(n_r,),
            in_specs=[
                pl.BlockSpec((B, tr, L), lambda r: (0, r, 0)),   # x tile (batch folded)
                pl.BlockSpec((tr, L), lambda r: (r, 0)),         # pe tile
            ],
            out_specs=pl.BlockSpec((B, tr, L), lambda r: (0, r, 0)),
            compiler_params=pltpu.CompilerParams(
                dimension_semantics=("parallel",),
                vmem_limit_bytes=vmem_limit,
            ),
            cost_estimate=cost,
        )(x3, pe2)

    # Non-folded path: batch is the fastest-varying grid axis, so the pe block index
    # is constant across consecutive steps and its HBM fetch is de-duplicated.
    return pl.pallas_call(
        _add_pe_kernel_rows,
        out_shape=jax.ShapeDtypeStruct((B, R, L), x3.dtype),
        grid=(n_r, B),
        in_specs=[
            pl.BlockSpec((pl.Squeezed(), tr, L), lambda r, b: (b, r, 0)),  # x tile
            pl.BlockSpec((tr, L), lambda r, b: (r, 0)),                    # pe tile
        ],
        out_specs=pl.BlockSpec((pl.Squeezed(), tr, L), lambda r, b: (b, r, 0)),
        compiler_params=pltpu.CompilerParams(
            dimension_semantics=("parallel", "parallel"),
            vmem_limit_bytes=vmem_limit,
        ),
        cost_estimate=cost,
    )(x3, pe2)


# ------------------------------- public API ----------------------------------


def positional_encoding_forward(x, pos_emb):
    """x: (B, S, D); pos_emb: (max_len, D). Returns x + pos_emb[:S] (broadcast over B)."""
    B, S, D = x.shape
    max_len, d_model = pos_emb.shape
    if S > max_len:
        raise ValueError(f"sequence length {S} exceeds positional table max_len {max_len}")
    if D != d_model:
        raise ValueError(f"d_model mismatch: x has {D}, pos_emb has {d_model}")

    # Lane-dense repack: when D is NOT a multiple of 128 but S*D is, reshape so the
    # last dim is 128 -> full-lane vst instead of masked partial stores.
    if D % 128 != 0 and (S * D) % 128 == 0:
        L = 128
        R = (S * D) // L
        pe = jax.lax.slice(pos_emb, (0, 0), (S, D)).astype(x.dtype).reshape(R, L)
        out = _pe_add_tiled(x.reshape(B, R, L), pe)
        return out.reshape(B, S, D)

    # General path (D already lane-dense, or S*D not repackable). When dtypes match,
    # pass the table unsliced: the pe BlockSpec bounds reads to the first rows, which
    # removes a separate S*D slice/copy XLA op before the kernel.
    if pos_emb.dtype == x.dtype:
        pe = pos_emb
    else:
        pe = jax.lax.slice(pos_emb, (0, 0), (S, D)).astype(x.dtype)
    # TODO(synk): the true ceiling is fusing this add into the adjacent embedding /
    # projection kernel; standalone it is bounded by 2-read/1-write HBM traffic.
    return _pe_add_tiled(x, pe)


def positional_encoding_ref(x, pos_emb):
    """Pure-JAX reference matching the PyTorch forward."""
    S = x.shape[1]
    return x + pos_emb[None, :S, :].astype(x.dtype)


if __name__ == "__main__":
    key = jax.random.PRNGKey(0)

    # Primary small test (d_model < 128 -> lane-dense repack path, batch-folded grid).
    d_model, max_len, B, S = 32, 64, 2, 8
    x = jax.random.normal(key, (B, S, d_model), dtype=jnp.float32)
    pos_emb = make_pos_emb(d_model, max_len)

    out = positional_encoding_forward(x, pos_emb)
    out = jax.block_until_ready(out)
    ref = positional_encoding_ref(x, pos_emb)
    assert out.shape == (B, S, d_model)
    assert jnp.allclose(out, ref, atol=1e-6, rtol=1e-6)

    # Secondary check exercising the general (D % 128 == 0) path with unsliced PE table.
    d_model2, S2 = 128, 16
    key2 = jax.random.PRNGKey(0)
    x2 = jax.random.normal(key2, (B, S2, d_model2), dtype=jnp.float32)
    pos_emb2 = make_pos_emb(d_model2, max_len)
    out2 = jax.block_until_ready(positional_encoding_forward(x2, pos_emb2))
    assert jnp.allclose(out2, positional_encoding_ref(x2, pos_emb2), atol=1e-6, rtol=1e-6)

    print("KERNEL_OK")
</pallas_src>

<mosaic_0001>
module attributes {stable_mosaic.version = 11 : i64} {
  func.func @_add_pe_kernel_batched(%arg0: i32, %arg1: memref<2x2x128xf32, #tpu.memory_space<vmem>>, %arg2: memref<2x128xf32, #tpu.memory_space<vmem>>, %arg3: memref<2x2x128xf32, #tpu.memory_space<vmem>>) attributes {dimension_semantics = [#tpu.dimension_semantics<parallel>], iteration_bounds = array<i64: 1>, scalar_prefetch = 0 : i64, scratch_operands = 0 : i64, tpu.core_type = #tpu.core_type<tc>, window_params = [{transform_indices = @transform_0, window_bounds = array<i64: 2, 2, 128>}, {transform_indices = @transform_1, window_bounds = array<i64: 2, 128>}, {transform_indices = @transform_2, window_bounds = array<i64: 2, 2, 128>}]} {
    %c0 = arith.constant 0 : index
    %c0_0 = arith.constant 0 : index
    %c0_1 = arith.constant 0 : index
    %0 = vector.load %arg1[%c0, %c0_0, %c0_1] : memref<2x2x128xf32, #tpu.memory_space<vmem>>, vector<2x2x128xf32>
    %c0_2 = arith.constant 0 : index
    %c0_3 = arith.constant 0 : index
    %1 = vector.load %arg2[%c0_2, %c0_3] : memref<2x128xf32, #tpu.memory_space<vmem>>, vector<2x128xf32>
    %2 = vector.shape_cast %1 : vector<2x128xf32> to vector<1x2x128xf32>
    %3 = vector.broadcast %2 : vector<1x2x128xf32> to vector<2x2x128xf32>
    %4 = arith.addf %0, %3 : vector<2x2x128xf32>
    %c0_4 = arith.constant 0 : index
    %c0_5 = arith.constant 0 : index
    %c0_6 = arith.constant 0 : index
    %5 = vector.load %arg3[%c0_4, %c0_5, %c0_6] : memref<2x2x128xf32, #tpu.memory_space<vmem>>, vector<2x2x128xf32>
    tpu.vector_store %arg3[%c0_4, %c0_5, %c0_6], %4 {strides = array<i32>} : memref<2x2x128xf32, #tpu.memory_space<vmem>>, vector<2x2x128xf32>,
    return
  }
  func.func @transform_0(%arg0: i32) -> (i32, i32, i32) {
    %c0_i32 = arith.constant 0 : i32
    %c0_i32_0 = arith.constant 0 : i32
    %c0_i32_1 = arith.constant 0 : i32
    return %c0_i32, %arg0, %c0_i32_0 : i32, i32, i32
  }
  func.func @transform_1(%arg0: i32) -> (i32, i32) {
    %c0_i32 = arith.constant 0 : i32
    %c0_i32_0 = arith.constant 0 : i32
    return %arg0, %c0_i32 : i32, i32
  }
  func.func @transform_2(%arg0: i32) -> (i32, i32, i32) {
    %c0_i32 = arith.constant 0 : i32
    %c0_i32_0 = arith.constant 0 : i32
    %c0_i32_1 = arith.constant 0 : i32
    return %c0_i32, %arg0, %c0_i32_0 : i32, i32, i32
  }
}

</mosaic_0001>

<llo_original>
// kernel: tpu_custom_call.1
$region0: #{tpu_custom_call.1}
  #allocation0 [shape = 'u32[]', space=smem, size = 0x4, offset = 0x4, fixed_abs, tag = 'smem constant byte address 0x4 - core index']
  #allocation1 [shape = 'u32[72,128]{1,0:T(1,128)}', space=vmem, size = 0x9000, scoped, tag = 'internal scratch']
  %s0 = inlined_call_operand.hbm [shape: f32[2,2,128], index: 0, kind: input, shape index: {}]
  %s1 = inlined_call_operand.hbm [shape: f32[2,128], index: 1, kind: input, shape index: {}]
  %s2 = inlined_call_operand.hbm [shape: f32[2,2,128], index: 2, kind: output, shape index: {}]
  %s3 = sld [smem:[#allocation0]]
  $region26: #{tpu_custom_call.1} parent=0
    _
  %s5 = ssub.s32 1, %s3
  %s6 = scalar_select 0, %s5, %s3
  $region1: #{tpu_custom_call.1} parent=0
    #allocation2 [shape = 'u8[2048]{0}', space=vmem, size = 0x800, scoped, tag = 'input window, operand 0, single buffered']
    #allocation3 [shape = 's32[1]{0}', space=sflag, size = 0x4, scoped, tag = 'scoped memory for tpu_custom_call.1']
    #allocation4 [shape = 's32[1]{0}', space=sflag, size = 0x4, scoped, tag = 'scoped memory for tpu_custom_call.1']
    #allocation5 [shape = 'u8[1024]{0}', space=vmem, size = 0x400, scoped, tag = 'input window, operand 1, single buffered']
    #allocation6 [shape = 's32[1]{0}', space=sflag, size = 0x4, scoped, tag = 'scoped memory for tpu_custom_call.1']
    #allocation7 [shape = 'u8[2048]{0}', space=vmem, size = 0x800, scoped, tag = 'output window, operand 0, single buffered']
    %7 = vsyncpa [#allocation3], 0
    %8 = vsyncpa [#allocation6], 0
    %9 = vsyncpa [#allocation4], 0
    // Predicated region
    $region2: #{tpu_custom_call.1} parent=1 // pred_check
      _
    $region3: #{tpu_custom_call.1} parent=1 // pred_check_branch
      %11 = sbr.rel (0) target = $region5
    $region4: #{tpu_custom_call.1} parent=1 // pred_region
      %13 = vsyncadd [#allocation3], 0
      %s14 = sshll.u32 %s0, 4
      %s15 = int_to_ptr.hbm [resolvable:$true] %s14
      %s16 = sshll.u32 [#allocation2], 4
      %s17 = int_to_ptr.vmem [resolvable:$true] %s16
      %22 = dma.hbm_to_vmem [thread:$0]  %s15, 64, %s17, [#allocation3], 32, 32, 2
    $region5: #{tpu_custom_call.1} parent=1 // pred_fallthru
      _
    // Predicated region
    $region6: #{tpu_custom_call.1} parent=1 // pred_check
      _
    $region7: #{tpu_custom_call.1} parent=1 // pred_check_branch
      %24 = sbr.rel (0) target = $region9
    $region8: #{tpu_custom_call.1} parent=1 // pred_region
      %26 = vsyncadd [#allocation6], 0
      %s28 = sshll.u32 %s1, 4
      %s29 = int_to_ptr.hbm [resolvable:$true] %s28
      %s30 = sshll.u32 [#allocation5], 4
      %s31 = int_to_ptr.vmem [resolvable:$true] %s30
      %33 = dma.hbm_to_vmem [thread:$0]  %s29, 32, %s31, [#allocation6]
    $region9: #{tpu_custom_call.1} parent=1 // pred_fallthru
      _
    // Predicated region
    $region10: #{tpu_custom_call.1} parent=1 // pred_check
      _
    $region11: #{tpu_custom_call.1} parent=1 // pred_check_branch
      %35 = sbr.rel (0) target = $region13
    $region12: #{tpu_custom_call.1} parent=1 // pred_region
      %37 = dma.done [#allocation3], 64
    $region13: #{tpu_custom_call.1} parent=1 // pred_fallthru
      _
    // Predicated region
    $region14: #{tpu_custom_call.1} parent=1 // pred_check
      _
    $region15: #{tpu_custom_call.1} parent=1 // pred_check_branch
      %39 = sbr.rel (0) target = $region17
    $region16: #{tpu_custom_call.1} parent=1 // pred_region
      %41 = dma.done [#allocation6], 32
    $region17: #{tpu_custom_call.1} parent=1 // pred_fallthru
      _
    %v42 = vld [vmem:[#allocation2] sm:$0x3]
    %v43 = vld [vmem:[#allocation2 + $0x2] sm:$0x3]
    %v44 = vld [vmem:[#allocation5] sm:$0x3]
    %v45 = vadd.f32 %v42, %v44
    %v46 = vadd.f32 %v43, %v44
    %47 = vst [vmem:[#allocation7] sm:$0x3] %v45
    %48 = vst [vmem:[#allocation7 + $0x2] sm:$0x3] %v46
    // Predicated region
    $region18: #{tpu_custom_call.1} parent=1 // pred_check
      _
    $region19: #{tpu_custom_call.1} parent=1 // pred_check_branch
      %50 = sbr.rel (0) target = $region21
    $region20: #{tpu_custom_call.1} parent=1 // pred_region
      %52 = vsyncadd [#allocation4], 0
      %s53 = sshll.u32 [#allocation7], 4
      %s54 = int_to_ptr.vmem [resolvable:$true] %s53
      %s55 = sshll.u32 %s2, 4
      %s56 = int_to_ptr.hbm [resolvable:$true] %s55
      %61 = dma.vmem_to_hbm [thread:$0]  %s54, 64, %s56, [#allocation4], 32, 32, 2
    $region21: #{tpu_custom_call.1} parent=1 // pred_fallthru
      _
    // Predicated region
    $region22: #{tpu_custom_call.1} parent=1 // pred_check
      _
    $region23: #{tpu_custom_call.1} parent=1 // pred_check_branch
      %63 = sbr.rel (0) target = $region25
    $region24: #{tpu_custom_call.1} parent=1 // pred_region
      %65 = dma.done [#allocation4], 64
    $region25: #{tpu_custom_call.1} parent=1 // pred_fallthru
      _
    %66 = vsyncpa [#allocation3], 1
    %67 = vsyncpa [#allocation6], 1
    %68 = vsyncpa [#allocation4], 1

</llo_original>
